<compile_context>
chip_gen: v7x
topology: tpu7x:2x2x1
jax: 0.10.0
libtpu: 0.0.40
codegen_flags: <defaults>
</compile_context>

<pallas_src>
import functools

import jax
import jax.numpy as jnp
from jax import lax
from jax.experimental import pallas as pl
from jax.experimental.pallas import tpu as pltpu


def _round_up(a, b):
    return (a + b - 1) // b * b


def classify_kernel(x_ref, w_ref, b_ref, o_ref, acc_ref, *, tail):
    # x_ref: (tn, C1, t_hw)   w_ref: (C1, C2) pre-scaled by 1/HW   b_ref: (1, C2)
    # o_ref: (tn, C2)         acc_ref: (tn, C1) f32 scratch, resident across axis 1
    hw_step = pl.program_id(1)
    last = pl.num_programs(1) - 1

    @pl.when(hw_step == 0)
    def _():
        acc_ref[...] = jnp.zeros_like(acc_ref)

    # Stream x in its native dtype; upcast per tile for f32 accumulation.
    x = x_ref[...].astype(jnp.float32)

    if tail:  # static python int: HW % t_hw != 0 -> mask the ragged last tile
        @pl.when(hw_step != last)
        def _():
            acc_ref[...] += jnp.sum(x, axis=-1)

        @pl.when(hw_step == last)
        def _():
            idx = lax.broadcasted_iota(jnp.int32, (1, 1, x.shape[-1]), 2)
            acc_ref[...] += jnp.sum(jnp.where(idx < tail, x, 0.0), axis=-1)
    else:
        acc_ref[...] += jnp.sum(x, axis=-1)

    @pl.when(hw_step == last)
    def _():
        # 1/HW already folded into w -> pooled matmul is just acc @ w + b.
        out = jnp.dot(acc_ref[...], w_ref[...].astype(jnp.float32),
                      preferred_element_type=jnp.float32)
        o_ref[...] = (out + b_ref[...].astype(jnp.float32)).astype(o_ref.dtype)


def classify_forward(x, conv_weight, conv_bias):
    """x: (N, C1, H, W) NCHW; conv_weight: (C2, C1, 1, 1); conv_bias: (C2,)"""
    N, C1, H, W = x.shape
    C2 = conv_weight.shape[0]
    HW = H * W
    x_itemsize = jnp.dtype(x.dtype).itemsize

    # ---- glue (no padding, no extra copies of x) -------------------------
    x_flat = x.reshape(N, C1, HW)                           # contiguous reshape
    # Fold the average-pool 1/HW into the weight; keep native dtype (bf16 ok).
    w_t = conv_weight.reshape(C2, C1).T * (1.0 / float(HW))  # (C1, C2)
    b = conv_bias.reshape(1, C2)

    # ---- tile selection ---------------------------------------------------
    # Out block (tn, C2) requires tn % 8 == 0 or tn == N; no N padding needed.
    tn = N if N <= 8 else 8

    try:
        vmem_cap = int(pltpu.get_tpu_info().vmem_capacity_bytes)
    except Exception:            # conservative fallback = v7x per-TC VMEM
        vmem_cap = 64 << 20

    # Resident fixed cost (VMEM-layout padded; weight/bias/out double-buffered).
    w_bytes = _round_up(C1, 8) * _round_up(C2, 128) * jnp.dtype(w_t.dtype).itemsize
    b_bytes = 8 * _round_up(C2, 128) * jnp.dtype(b.dtype).itemsize
    o_bytes = _round_up(tn, 8) * _round_up(C2, 128) * x_itemsize
    acc_bytes = _round_up(tn, 8) * _round_up(C1, 128) * 4
    fixed = 2 * (w_bytes + b_bytes + o_bytes) + acc_bytes

    # Give the double-buffered x stream ~55% of VMEM minus the fixed cost.
    x_budget = max(int(vmem_cap * 0.55) - fixed, 4 << 20)
    per_buf = x_budget // 2
    row_bytes = tn * _round_up(C1, 8) * x_itemsize
    max_t_hw = max(128, (per_buf // row_bytes) // 128 * 128)

    if HW <= max_t_hw:
        t_hw = HW            # full spatial extent: single step, no masking
    else:
        t_hw = max_t_hw      # multiple of 128; ragged tail masked in-kernel
    tail = HW % t_hw         # 0 when t_hw == HW or t_hw divides HW

    grid = (pl.cdiv(N, tn), pl.cdiv(HW, t_hw))

    x_block_bytes = tn * _round_up(C1, 8) * _round_up(t_hw, 128) * x_itemsize
    needed = 2 * x_block_bytes + fixed + (4 << 20)
    vmem_limit = int(min(max(needed, 16 << 20), vmem_cap))

    cost = pl.CostEstimate(
        flops=int(N * C1 * HW + 2 * N * C1 * C2),
        transcendentals=0,
        bytes_accessed=int(N * C1 * HW * x_itemsize
                           + C1 * C2 * jnp.dtype(w_t.dtype).itemsize
                           + C2 * jnp.dtype(b.dtype).itemsize
                           + N * C2 * x_itemsize),
    )

    kernel = functools.partial(classify_kernel, tail=tail)

    return pl.pallas_call(
        kernel,
        out_shape=jax.ShapeDtypeStruct((N, C2), x.dtype),
        grid_spec=pltpu.PrefetchScalarGridSpec(
            num_scalar_prefetch=0,
            grid=grid,
            in_specs=[
                # x: new batch tile per i, new spatial tile per j.
                pl.BlockSpec((tn, C1, t_hw), lambda i, j: (i, 0, j)),
                # weight / bias: constant block -> fetched once, stays resident.
                pl.BlockSpec((C1, C2), lambda i, j: (0, 0)),
                pl.BlockSpec((1, C2), lambda i, j: (0, 0)),
            ],
            # output block ignores the reduction index -> one writeback per
            # batch tile, written only on the last spatial step.
            out_specs=pl.BlockSpec((tn, C2), lambda i, j: (i, 0)),
            scratch_shapes=[pltpu.VMEM((tn, C1), jnp.float32)],
        ),
        compiler_params=pltpu.CompilerParams(
            dimension_semantics=("parallel", "arbitrary"),
            vmem_limit_bytes=vmem_limit,
        ),
        cost_estimate=cost,
    )(x_flat, w_t, b)


def classify_reference(x, conv_weight, conv_bias):
    """Pure-JAX reference mirroring the PyTorch forward."""
    N, C1, H, W = x.shape
    C2 = conv_weight.shape[0]
    pooled = jnp.mean(x.astype(jnp.float32), axis=(2, 3))         # (N, C1)
    w = conv_weight.reshape(C2, C1).astype(jnp.float32)
    return pooled @ w.T + conv_bias.astype(jnp.float32)[None, :]  # (N, C2)


if __name__ == "__main__":
    # Small, deterministic example shapes: N=2, C1=4, H=W=16, C2=8.
    key = jax.random.PRNGKey(0)
    kx, kw, kb = jax.random.split(key, 3)

    N, C1, H, W, C2 = 2, 4, 16, 16, 8
    x = jax.random.normal(kx, (N, C1, H, W), dtype=jnp.float32)
    # Conv2d(c1, c2, k=1) parameters (deterministic synthetic init).
    conv_weight = jax.random.normal(kw, (C2, C1, 1, 1), dtype=jnp.float32) * 0.1
    conv_bias = jax.random.normal(kb, (C2,), dtype=jnp.float32) * 0.1

    out = classify_forward(x, conv_weight, conv_bias)
    out = jax.block_until_ready(out)

    ref = classify_reference(x, conv_weight, conv_bias)
    assert out.shape == (N, C2), out.shape
    assert jnp.allclose(out, ref, atol=1e-5, rtol=1e-5), (
        f"max abs err = {jnp.max(jnp.abs(out - ref))}")

    print("KERNEL_OK")
</pallas_src>

<mosaic_0001>
module attributes {stable_mosaic.version = 11 : i64} {
  func.func @classify_kernel(%arg0: i32, %arg1: i32, %arg2: memref<2x4x256xf32, #tpu.memory_space<vmem>>, %arg3: memref<4x8xf32, #tpu.memory_space<vmem>>, %arg4: memref<1x8xf32, #tpu.memory_space<vmem>>, %arg5: memref<2x8xf32, #tpu.memory_space<vmem>>, %arg6: memref<2x4xf32, #tpu.memory_space<vmem>>) attributes {dimension_semantics = [#tpu.dimension_semantics<parallel>, #tpu.dimension_semantics<arbitrary>], iteration_bounds = array<i64: 1, 1>, scalar_prefetch = 0 : i64, scratch_operands = 1 : i64, tpu.core_type = #tpu.core_type<tc>, window_params = [{transform_indices = @transform_0, window_bounds = array<i64: 2, 4, 256>}, {pipeline_mode = #tpu.pipeline_mode<synchronous>, transform_indices = @transform_1, window_bounds = array<i64: 4, 8>}, {pipeline_mode = #tpu.pipeline_mode<synchronous>, transform_indices = @transform_2, window_bounds = array<i64: 1, 8>}, {transform_indices = @transform_3, window_bounds = array<i64: 2, 8>}]} {
    %c0_i32 = arith.constant 0 : i32
    %0 = arith.cmpi eq, %arg1, %c0_i32 : i32
    %1 = arith.extui %0 : i1 to i32
    %c0_i32_0 = arith.constant 0 : i32
    %2 = arith.cmpi ne, %1, %c0_i32_0 : i32
    scf.if %2 {
      %cst_9 = arith.constant 0.000000e+00 : f32
      %11 = vector.broadcast %cst_9 : f32 to vector<2x4xf32>
      %c0_10 = arith.constant 0 : index
      %c0_11 = arith.constant 0 : index
      %12 = vector.load %arg6[%c0_10, %c0_11] : memref<2x4xf32, #tpu.memory_space<vmem>>, vector<2x4xf32>
      tpu.vector_store %arg6[%c0_10, %c0_11], %11 {strides = array<i32>} : memref<2x4xf32, #tpu.memory_space<vmem>>, vector<2x4xf32>,
    } else {
    }
    %c0 = arith.constant 0 : index
    %c0_1 = arith.constant 0 : index
    %c0_2 = arith.constant 0 : index
    %3 = vector.load %arg2[%c0, %c0_1, %c0_2] : memref<2x4x256xf32, #tpu.memory_space<vmem>>, vector<2x4x256xf32>
    %c0_3 = arith.constant 0 : index
    %c0_4 = arith.constant 0 : index
    %4 = vector.load %arg6[%c0_3, %c0_4] : memref<2x4xf32, #tpu.memory_space<vmem>>, vector<2x4xf32>
    %cst = arith.constant dense<0.000000e+00> : vector<2x4xf32>
    %5 = vector.multi_reduction <add>, %3, %cst [2] : vector<2x4x256xf32> to vector<2x4xf32>
    %6 = arith.addf %4, %5 : vector<2x4xf32>
    %c0_5 = arith.constant 0 : index
    %c0_6 = arith.constant 0 : index
    %7 = vector.load %arg6[%c0_5, %c0_6] : memref<2x4xf32, #tpu.memory_space<vmem>>, vector<2x4xf32>
    tpu.vector_store %arg6[%c0_5, %c0_6], %6 {strides = array<i32>} : memref<2x4xf32, #tpu.memory_space<vmem>>, vector<2x4xf32>,
    %c0_i32_7 = arith.constant 0 : i32
    %8 = arith.cmpi eq, %arg1, %c0_i32_7 : i32
    %9 = arith.extui %8 : i1 to i32
    %c0_i32_8 = arith.constant 0 : i32
    %10 = arith.cmpi ne, %9, %c0_i32_8 : i32
    scf.if %10 {
      %c0_9 = arith.constant 0 : index
      %c0_10 = arith.constant 0 : index
      %11 = vector.load %arg6[%c0_9, %c0_10] : memref<2x4xf32, #tpu.memory_space<vmem>>, vector<2x4xf32>
      %c0_11 = arith.constant 0 : index
      %c0_12 = arith.constant 0 : index
      %12 = vector.load %arg3[%c0_11, %c0_12] : memref<4x8xf32, #tpu.memory_space<vmem>>, vector<4x8xf32>
      %cst_13 = arith.constant dense<0.000000e+00> : vector<2x8xf32>
      %13 = tpu.matmul %11, %12, %cst_13 {dimension_numbers = #tpu.dot_dimension_numbers<[1], [0], [0], [1], [0, 0, 1, 1], [], []>} : vector<2x4xf32>, vector<4x8xf32>, vector<2x8xf32> -> vector<2x8xf32>
      %c0_14 = arith.constant 0 : index
      %c0_15 = arith.constant 0 : index
      %14 = vector.load %arg4[%c0_14, %c0_15] : memref<1x8xf32, #tpu.memory_space<vmem>>, vector<1x8xf32>
      %15 = vector.broadcast %14 : vector<1x8xf32> to vector<2x8xf32>
      %16 = arith.addf %13, %15 : vector<2x8xf32>
      %c0_16 = arith.constant 0 : index
      %c0_17 = arith.constant 0 : index
      %17 = vector.load %arg5[%c0_16, %c0_17] : memref<2x8xf32, #tpu.memory_space<vmem>>, vector<2x8xf32>
      tpu.vector_store %arg5[%c0_16, %c0_17], %16 {strides = array<i32>} : memref<2x8xf32, #tpu.memory_space<vmem>>, vector<2x8xf32>,
    } else {
    }
    return
  }
  func.func @transform_0(%arg0: i32, %arg1: i32) -> (i32, i32, i32) {
    %c0_i32 = arith.constant 0 : i32
    %c0_i32_0 = arith.constant 0 : i32
    return %arg0, %c0_i32, %arg1 : i32, i32, i32
  }
  func.func @transform_1(%arg0: i32, %arg1: i32) -> (i32, i32) {
    %c0_i32 = arith.constant 0 : i32
    %c0_i32_0 = arith.constant 0 : i32
    %c0_i32_1 = arith.constant 0 : i32
    return %c0_i32, %c0_i32_0 : i32, i32
  }
  func.func @transform_2(%arg0: i32, %arg1: i32) -> (i32, i32) {
    %c0_i32 = arith.constant 0 : i32
    %c0_i32_0 = arith.constant 0 : i32
    %c0_i32_1 = arith.constant 0 : i32
    return %c0_i32, %c0_i32_0 : i32, i32
  }
  func.func @transform_3(%arg0: i32, %arg1: i32) -> (i32, i32) {
    %c0_i32 = arith.constant 0 : i32
    %c0_i32_0 = arith.constant 0 : i32
    return %arg0, %c0_i32 : i32, i32
  }
}

</mosaic_0001>

<llo_original>
// kernel: tpu_custom_call.1
$region0: #{tpu_custom_call.1}
  #allocation0 [shape = 'u32[]', space=smem, size = 0x4, offset = 0x4, fixed_abs, tag = 'smem constant byte address 0x4 - core index']
  #allocation1 [shape = 'u32[144,128]{1,0:T(1,128)}', space=vmem, size = 0x12000, scoped, tag = 'internal scratch']
  #allocation2 [shape = 'f32[2,4]{1,0:T(2,128)}', space=vmem, size = 0x400, scoped, tag = 'scratch operand']
  %s0 = inlined_call_operand.hbm [shape: f32[2,4,256], index: 0, kind: input, shape index: {}]
  %s1 = inlined_call_operand.hbm [shape: f32[4,8], index: 1, kind: input, shape index: {}]
  %s2 = inlined_call_operand.vmem [shape: f32[1,8], index: 2, kind: input, shape index: {}]
  %s3 = inlined_call_operand.hbm [shape: f32[2,8], index: 3, kind: output, shape index: {}]
  %s4 = sld [smem:[#allocation0]]
  $region38: #{tpu_custom_call.1} parent=0
    _
  %s6 = ssub.s32 1, %s4
  %s7 = scalar_select 0, %s6, %s4
  $region1: #{tpu_custom_call.1} parent=0
    #allocation3 [shape = 'u8[8192]{0}', space=vmem, size = 0x2000, scoped, tag = 'input window, operand 0, single buffered']
    #allocation4 [shape = 's32[1]{0}', space=sflag, size = 0x4, scoped, tag = 'scoped memory for tpu_custom_call.1']
    #allocation5 [shape = 's32[1]{0}', space=sflag, size = 0x4, scoped, tag = 'scoped memory for tpu_custom_call.1']
    #allocation6 [shape = 'u8[2048]{0}', space=vmem, size = 0x800, scoped, tag = 'input window, operand 1, single buffered']
    #allocation7 [shape = 's32[1]{0}', space=sflag, size = 0x4, scoped, tag = 'scoped memory for tpu_custom_call.1']
    #allocation8 [shape = 'u8[1024]{0}', space=vmem, size = 0x400, scoped, tag = 'output window, operand 0, single buffered']
    %8 = vsyncpa [#allocation4], 0
    %9 = vsyncpa [#allocation7], 0
    %10 = vsyncpa [#allocation5], 0
    // Predicated region
    $region2: #{tpu_custom_call.1} parent=1 // pred_check
      _
    $region3: #{tpu_custom_call.1} parent=1 // pred_check_branch
      %12 = sbr.rel (0) target = $region5
    $region4: #{tpu_custom_call.1} parent=1 // pred_region
      %s14 = ssub.s32 256, 256
      %15 = vsyncadd [#allocation4], %s14
      %s16 = sshll.u32 [#allocation3], 4
      %s17 = int_to_ptr.vmem [resolvable:$true] %s16
      %22 = dma.hbm_to_vmem [thread:$0]  %s0, 256, %s17, [#allocation4], 128, 128, 8
    $region5: #{tpu_custom_call.1} parent=1 // pred_fallthru
      _
    // Predicated region
    $region6: #{tpu_custom_call.1} parent=1 // pred_check
      _
    $region7: #{tpu_custom_call.1} parent=1 // pred_check_branch
      %24 = sbr.rel (0) target = $region9
    $region8: #{tpu_custom_call.1} parent=1 // pred_region
      %s26 = ssub.s32 64, 64
      %27 = vsyncadd [#allocation7], %s26
      %s29 = sshll.u32 [#allocation6], 4
      %s30 = int_to_ptr.vmem [resolvable:$true] %s29
      %32 = dma.hbm_to_vmem [thread:$0]  %s1, 64, %s30, [#allocation7]
    $region9: #{tpu_custom_call.1} parent=1 // pred_fallthru
      _
    // Predicated region
    $region10: #{tpu_custom_call.1} parent=1 // pred_check
      _
    $region11: #{tpu_custom_call.1} parent=1 // pred_check_branch
      %34 = sbr.rel (0) target = $region13
    $region12: #{tpu_custom_call.1} parent=1 // pred_region
      _
    $region13: #{tpu_custom_call.1} parent=1 // pred_fallthru
      _
    // Predicated region
    $region14: #{tpu_custom_call.1} parent=1 // pred_check
      _
    $region15: #{tpu_custom_call.1} parent=1 // pred_check_branch
      %36 = sbr.rel (0) target = $region17
    $region16: #{tpu_custom_call.1} parent=1 // pred_region
      %37 = dma.done [#allocation4], 256
    $region17: #{tpu_custom_call.1} parent=1 // pred_fallthru
      _
    // Predicated region
    $region18: #{tpu_custom_call.1} parent=1 // pred_check
      _
    $region19: #{tpu_custom_call.1} parent=1 // pred_check_branch
      %39 = sbr.rel (0) target = $region21
    $region20: #{tpu_custom_call.1} parent=1 // pred_region
      %40 = dma.done [#allocation7], 64
    $region21: #{tpu_custom_call.1} parent=1 // pred_fallthru
      _
    %p41 = scmp.eq.s32.totalorder 0, 0
    // Predicated region
    $region22: #{tpu_custom_call.1} parent=1 // pred_check
      %p42 = pneg %p41
    $region23: #{tpu_custom_call.1} parent=1 // pred_check_branch
      %44 = sbr.rel (%p42) target = $region25
    $region24: #{tpu_custom_call.1} parent=1 // pred_region
      %vm45 = vcmask 25600
      %46 = vst.msk [vmem:[#allocation2] sm:$0x3] %vm45, 0.0
    $region25: #{tpu_custom_call.1} parent=1 // pred_fallthru
      _
    %v47 = vld [vmem:[#allocation3] sm:$0xff]
    %v48 = vld [vmem:[#allocation3 + $0x8] sm:$0xff]
    %v49 = vld [vmem:[#allocation2] sm:$0x3]
    %v52 = vcombine.high %v47, %v47
    %v53 = vcombine.high %v48, %v48
    %vm56 = vcmask 1043456
    %v57 = vsel %vm56, %v47, 0.0
    %v58 = vsel %vm56, %v52, 0.0
    %v59 = vadd.f32 %v57, %v58
    %60 = vadd.xlane.f32.xlu0 %v59
    %v61 = vpop.xlane.xlu0 %60
    %v62 = vsel %vm56, %v48, 0.0
    %v63 = vsel %vm56, %v53, 0.0
    %v64 = vadd.f32 %v62, %v63
    %65 = vadd.xlane.f32.xlu0 %v64
    %v66 = vpop.xlane.xlu0 %65
    %v69 = vlaneseq
    %v70 = vand.u32 %v69, 127
    %v71 = vlaneseq
    %v72 = vshrl.u32 %v71, 7
    %v73 = vsub.s32 %v70, %v72
    %v74 = vrot.slane %v61, %v73
    %v75 = vlaneseq
    %v76 = vshrl.u32 %v75, 7
    %v77 = vsub.s32 %v70, %v76
    %v78 = vrot.slane %v66, %v77
    %vm79 = vcmask 1041409
    %v80 = vsel %vm79, %v78, %v74
    %v82 = vadd.f32 %v49, %v80
    %vm83 = vcmask 25600
    %84 = vst.msk [vmem:[#allocation2] sm:$0x3] %vm83, %v82
    // Predicated region
    $region26: #{tpu_custom_call.1} parent=1 // pred_check
      %p85 = pneg %p41
    $region27: #{tpu_custom_call.1} parent=1 // pred_check_branch
      %87 = sbr.rel (%p85) target = $region29
    $region28: #{tpu_custom_call.1} parent=1 // pred_region
      %v88 = vld [vmem:[#allocation2] sm:$0x3]
      %v89 = vld [vmem:[#allocation6] sm:$0xf]
      %v90 = vld [vmem:[%s2] sm:$0x1]
      %v92 = vlaneseq
      %v93 = vshrl.u32 %v92, 7
      %v94 = vsub.s32 0, %v93
      %v95 = vrot.slane %v90, %v94
      %vm97 = vcmask 31744
      %v99 = vsel %vm97, %v88, 0
      %v102 = vsel %vm56, %v89, 0
      %104 = vmatprep.subr.mxu0 0.0
      %105 = vmatpush1.msra.mxu0 %v102
      %106 = vmatprep.subr.mxu0 0.0
      %107 = vmatpush1.msra.mxu0 0.0
      %108 = vmatprep.subr.mxu0 0.0
      %109 = vmatpush1.msra.mxu0 0.0
      %110 = vmatprep.subr.mxu0 0.0
      %111 = vmatpush1.msra.mxu0 0.0
      %112 = vmatprep.subr.mxu0 0.0
      %113 = vmatpush1.msra.mxu0 0.0
      %114 = vmatprep.subr.mxu0 0.0
      %115 = vmatpush1.msra.mxu0 0.0
      %116 = vmatprep.subr.mxu0 0.0
      %117 = vmatpush1.msra.mxu0 0.0
      %118 = vmatprep.subr.mxu0 0.0
      %119 = vmatpush1.msra.mxu0 0.0
      %120 = vmatprep.subr.mxu0 0.0
      %121 = vmatpush1.msra.mxu0 0.0
      %122 = vmatprep.subr.mxu0 0.0
      %123 = vmatpush1.msra.mxu0 0.0
      %124 = vmatprep.subr.mxu0 0.0
      %125 = vmatpush1.msra.mxu0 0.0
      %126 = vmatprep.subr.mxu0 0.0
      %127 = vmatpush1.msra.mxu0 0.0
      %128 = vmatprep.subr.mxu0 0.0
      %129 = vmatpush1.msra.mxu0 0.0
      %130 = vmatprep.subr.mxu0 0.0
      %131 = vmatpush1.msra.mxu0 0.0
      %132 = vmatprep.subr.mxu0 0.0
      %133 = vmatpush1.msra.mxu0 0.0
      %134 = vmatprep.subr.mxu0 0.0
      %135 = vmatpush1.msra.mxu0 0.0
      %136 = vmatprep.subr.mxu0 0.0
      %137 = vmatpush1.msra.mxu0 0.0
      %138 = vmatprep.subr.mxu0 0.0
      %139 = vmatpush1.msra.mxu0 0.0
      %140 = vmatprep.subr.mxu0 0.0
      %141 = vmatpush1.msra.mxu0 0.0
      %142 = vmatprep.subr.mxu0 0.0
      %143 = vmatpush1.msra.mxu0 0.0
      %144 = vmatprep.subr.mxu0 0.0
      %145 = vmatpush1.msra.mxu0 0.0
      %146 = vmatprep.subr.mxu0 0.0
      %147 = vmatpush1.msra.mxu0 0.0
      %148 = vmatprep.subr.mxu0 0.0
      %149 = vmatpush1.msra.mxu0 0.0
      %150 = vmatprep.subr.mxu0 0.0
      %151 = vmatpush1.msra.mxu0 0.0
      %152 = vmatprep.subr.mxu0 0.0
      %153 = vmatpush1.msra.mxu0 0.0
      %154 = vmatprep.subr.mxu0 0.0
      %155 = vmatpush1.msra.mxu0 0.0
      %156 = vmatprep.subr.mxu0 0.0
      %157 = vmatpush1.msra.mxu0 0.0
      %158 = vmatprep.subr.mxu0 0.0
      %159 = vmatpush1.msra.mxu0 0.0
      %160 = vmatprep.subr.mxu0 0.0
      %161 = vmatpush1.msra.mxu0 0.0
      %162 = vmatprep.subr.mxu0 0.0
      %163 = vmatpush1.msra.mxu0 0.0
      %164 = vmatprep.subr.mxu0 0.0
      %165 = vmatpush1.msra.mxu0 0.0
      %166 = vmatprep.subr.mxu0 0.0
      %167 = vmatpush1.msra.mxu0 0.0
      %168 = vmatprep.mubr.f32.mxu0 0.0
      %169 = vmatmul.mubr.f32.gmra.mrb[0].mxu0 %v99
      %v170 = vpop.f32.mrb[0].mxu0
      %v171 = vadd.f32 %v95, %v170
      %v172 = vpop.f32.mrb[0].mxu0
      %173 = vdwg.mxu0
      %vm174 = vcmask 58368
      %175 = vst.msk [vmem:[#allocation8] sm:$0x3] %vm174, %v171
    $region29: #{tpu_custom_call.1} parent=1 // pred_fallthru
      _
    // Predicated region
    $region30: #{tpu_custom_call.1} parent=1 // pred_check
      _
    $region31: #{tpu_custom_call.1} parent=1 // pred_check_branch
      %177 = sbr.rel (0) target = $region33
    $region32: #{tpu_custom_call.1} parent=1 // pred_region
      %s179 = ssub.s32 32, 32
      %180 = vsyncadd [#allocation5], %s179
      %s182 = sshll.u32 [#allocation8], 4
      %s183 = int_to_ptr.vmem [resolvable:$true] %s182
      %185 = dma.vmem_to_hbm [thread:$0]  %s183, 32, %s3, [#allocation5]
    $region33: #{tpu_custom_call.1} parent=1 // pred_fallthru
      _
    // Predicated region
    $region34: #{tpu_custom_call.1} parent=1 // pred_check
      _
    $region35: #{tpu_custom_call.1} parent=1 // pred_check_branch
      %187 = sbr.rel (0) target = $region37
    $region36: #{tpu_custom_call.1} parent=1 // pred_region
      %188 = dma.done [#allocation5], 32
    $region37: #{tpu_custom_call.1} parent=1 // pred_fallthru
      _
    %189 = vsyncpa [#allocation4], 1
    %190 = vsyncpa [#allocation7], 1
    %191 = vsyncpa [#allocation5], 1

</llo_original>
